<compile_context>
chip_gen: v6e
topology: v6e:2x2x1
jax: 0.10.0
libtpu: 0.0.40
codegen_flags: <defaults>
</compile_context>

<pallas_src>
import functools
import re

import jax
import jax.numpy as jnp
from jax import lax
from jax.experimental import pallas as pl
from jax.experimental.pallas import tpu as pltpu

EPS_F32 = float(jnp.finfo(jnp.float32).eps)  # == torch.finfo(torch.float32).eps


def _smooth_f1_kernel(logits_ref, labels_ref, out_ref, s_yy_ref, s_den_ref,
                      *, half_beta, half_eta, eps, n_rows, batch_tile,
                      compute_dtype):
    """grid = (class_tiles, batch_tiles); batch (axis 1) is the reduction axis.

    Two (8, class_tile) f32 accumulator bands, VALU-only row-band adds every
    step, single cross-sublane reduce at the last batch step:
      s_yy  = sum(y_hat * y)
      s_den = sum(y_hat + y)        (== tp2 + fp + fn, exact identity)
      f1    = 2*s_yy / (s_den + eps)
    """
    bi = pl.program_id(1)
    last = pl.num_programs(1) - 1

    @pl.when(bi == 0)
    def _init():
        s_yy_ref[...] = jnp.zeros_like(s_yy_ref)
        s_den_ref[...] = jnp.zeros_like(s_den_ref)

    # Elementwise phase. Single-transcendental sigmoid:
    #   expit(beta*x - eta) == 0.5 + 0.5 * tanh(0.5*beta*x - 0.5*eta)
    x = logits_ref[...].astype(compute_dtype)
    y_hat = (0.5 + 0.5 * jnp.tanh(half_beta * x - half_eta)).astype(jnp.float32)
    y = labels_ref[...].astype(jnp.float32)

    def _accumulate(yh, yy):
        bt, ct = yh.shape
        yh3 = yh.reshape(bt // 8, 8, ct)   # layout-preserving sublane split
        y3 = yy.reshape(bt // 8, 8, ct)
        # Cross-vreg adds only (leading axis); no per-step XLU reduce.
        s_yy_ref[...] += jnp.sum(yh3 * y3, axis=0)
        s_den_ref[...] += jnp.sum(yh3 + y3, axis=0)

    if n_rows % batch_tile != 0:
        # Only the final batch block is ragged: mask only there; full blocks
        # pay zero masking cost.  (Static Python branch: code emitted only
        # when N is actually ragged.)
        @pl.when(bi != last)
        def _full():
            _accumulate(y_hat, y)

        @pl.when(bi == last)
        def _ragged():
            rows = lax.broadcasted_iota(jnp.int32, (batch_tile, 1), 0)
            valid = (bi * batch_tile + rows) < n_rows
            # Keep this a select: NaNs in padded rows must not propagate.
            _accumulate(jnp.where(valid, y_hat, 0.0), jnp.where(valid, y, 0.0))
    else:
        _accumulate(y_hat, y)

    @pl.when(bi == last)
    def _finalize():
        s_yy = jnp.sum(s_yy_ref[...], axis=0, keepdims=True)    # (1, ct)
        s_den = jnp.sum(s_den_ref[...], axis=0, keepdims=True)
        out_ref[...] = 1.0 - (2.0 * s_yy) / (s_den + eps)       # lane-dense


def _tpu_generation():
    """Best-effort TPU generation from device_kind ('TPU v6e' -> 6)."""
    try:
        kind = jax.devices()[0].device_kind
    except Exception:
        return 0
    m = re.search(r"(\d+)", kind)
    return int(m.group(1)) if m else 0


def smooth_macro_f1_loss(logits, labels, *, threshold=0.5, beta=1.0, eta=0.0,
                         batch_tile=1024, class_tile=None):
    """Pallas TPU implementation of SmoothMacroF1Loss.forward.

    logits, labels: (N, C) in any float/int dtype (f32 accumulation inside the
    kernel). Returns a scalar float32 loss.
    `threshold` is kept for API parity; the PyTorch forward never uses it.
    """
    del threshold  # unused in the PyTorch forward pass as well
    n, c = logits.shape
    assert labels.shape == (n, c)

    gen = _tpu_generation()
    single_tc = gen in (4, 5, 6)            # one TensorCore per chip
    small_vmem = (gen >= 7) or (gen == 0)   # v7x: 64 MiB/TC; unknown: be safe

    item_bytes = logits.dtype.itemsize + labels.dtype.itemsize
    # Budget for the double-buffered input blocks (both operands, x2 buffers).
    in_budget = (24 << 20) if small_vmem else (48 << 20)

    # --- class (lane) tile --------------------------------------------------
    if class_tile is None:
        if (not single_tc) and gen >= 7 and c % 256 == 0:
            # exactly one class tile per TensorCore (megacore) on v7x
            class_tile = c // 2
        elif 2 * 8 * c * item_bytes <= in_budget:
            # single-TC (or unknown): full C -> contiguous DMA, one finalize
            class_tile = c
        else:
            class_tile = c
            for cand in (1024, 512, 256, 128):
                if c % cand == 0 and 2 * 8 * cand * item_bytes <= in_budget:
                    class_tile = cand
                    break
    assert c % class_tile == 0, "class_tile must divide C"

    # --- batch (sublane) tile: big (hides ~0.35us/step overhead), multiple of
    # 8, no bigger than needed for N, within the generation-aware budget.
    def _round8(v):
        return max(8, ((v + 7) // 8) * 8)

    bt = _round8(min(int(batch_tile), _round8(n)))
    while bt > 64 and 2 * bt * class_tile * item_bytes > in_budget:
        bt = max(64, ((bt // 2) // 8) * 8)

    grid = (c // class_tile, pl.cdiv(n, bt))

    # bf16 elementwise only where the chip has bf16 VALU/EUP (v6e/v7x) AND the
    # logits are already <=16-bit floats; accumulation is always f32.
    if (gen >= 6 and jnp.issubdtype(logits.dtype, jnp.floating)
            and logits.dtype.itemsize <= 2):
        compute_dtype = jnp.bfloat16
    else:
        compute_dtype = jnp.float32

    kernel = functools.partial(
        _smooth_f1_kernel,
        half_beta=0.5 * float(beta), half_eta=0.5 * float(eta), eps=EPS_F32,
        n_rows=n, batch_tile=bt, compute_dtype=compute_dtype)

    vmem_need = (2 * bt * class_tile * item_bytes   # double-buffered inputs
                 + 2 * 8 * class_tile * 4           # two accumulator bands
                 + 2 * 1 * class_tile * 4)          # output block (x2 buffers)
    vmem_cap = (56 << 20) if small_vmem else (100 << 20)
    vmem_limit = int(min(max(32 << 20, vmem_need + (4 << 20)), vmem_cap))

    cost = pl.CostEstimate(
        flops=8 * n * c,
        transcendentals=n * c,
        bytes_accessed=n * c * item_bytes + c * 4)

    per_class = pl.pallas_call(
        kernel,
        out_shape=jax.ShapeDtypeStruct((1, c), jnp.float32),
        grid_spec=pltpu.PrefetchScalarGridSpec(
            num_scalar_prefetch=0,
            grid=grid,
            in_specs=[
                pl.BlockSpec((bt, class_tile), lambda ci, bi: (bi, ci)),
                pl.BlockSpec((bt, class_tile), lambda ci, bi: (bi, ci)),
            ],
            out_specs=pl.BlockSpec((1, class_tile), lambda ci, bi: (0, ci)),
            scratch_shapes=[pltpu.VMEM((8, class_tile), jnp.float32)] * 2,
        ),
        compiler_params=pltpu.CompilerParams(
            # TODO(synk): on v7x, evaluate pltpu.CORE_PARALLEL on the class
            # axis if plain "parallel" does not actually shard across the 2 TCs.
            dimension_semantics=("parallel", "arbitrary"),
            vmem_limit_bytes=vmem_limit,
        ),
        cost_estimate=cost,
    )(logits, labels)

    return jnp.mean(per_class)   # mean over classes -> scalar


def _reference(logits, labels, *, beta=1.0, eta=0.0):
    y_hat = jax.nn.sigmoid(beta * logits.astype(jnp.float32) - eta)
    y = labels.astype(jnp.float32)
    tp2 = jnp.sum(y_hat * y, axis=0) * 2.0
    fp = jnp.sum(y_hat * (1.0 - y), axis=0)
    fn = jnp.sum((1.0 - y_hat) * y, axis=0)
    f1 = tp2 / (tp2 + fp + fn + EPS_F32)
    return jnp.mean(1.0 - f1)


if __name__ == "__main__":
    key = jax.random.PRNGKey(0)
    k1, k2, k3, k4 = jax.random.split(key, 4)

    # Test 1: small lane-aligned shapes, default tiling.
    N, C = 64, 128
    logits = jax.random.normal(k1, (N, C), dtype=jnp.float32)
    labels = (jax.random.uniform(k2, (N, C)) > 0.5).astype(jnp.float32)
    loss = jax.block_until_ready(
        smooth_macro_f1_loss(logits, labels, threshold=0.5, beta=1.0, eta=0.0))
    ref = jax.block_until_ready(_reference(logits, labels, beta=1.0, eta=0.0))
    assert jnp.allclose(loss, ref, rtol=1e-5, atol=1e-6), (loss, ref)

    # Test 2: ragged batch (last-block mask path), non-default beta/eta, small
    # batch tiles to force several reduction steps.
    N2, C2 = 200, 256
    logits2 = jax.random.normal(k3, (N2, C2), dtype=jnp.float32)
    labels2 = (jax.random.uniform(k4, (N2, C2)) > 0.7).astype(jnp.float32)
    loss2 = jax.block_until_ready(
        smooth_macro_f1_loss(logits2, labels2, beta=1.3, eta=0.2, batch_tile=64))
    ref2 = jax.block_until_ready(_reference(logits2, labels2, beta=1.3, eta=0.2))
    assert jnp.allclose(loss2, ref2, rtol=1e-5, atol=1e-6), (loss2, ref2)

    # Test 3: narrow input dtypes (bf16 logits, int8 labels). On v6e/v7x the
    # elementwise phase runs in bf16 (f32 accumulation), so compare against the
    # f32 reference with a relaxed tolerance.
    logits3 = logits.astype(jnp.bfloat16)
    labels3 = labels.astype(jnp.int8)
    loss3 = jax.block_until_ready(smooth_macro_f1_loss(logits3, labels3))
    ref3 = jax.block_until_ready(
        _reference(logits3.astype(jnp.float32), labels3.astype(jnp.float32)))
    assert jnp.allclose(loss3, ref3, rtol=5e-3, atol=5e-3), (loss3, ref3)

    print("KERNEL_OK")
</pallas_src>

<mosaic_0001>
module attributes {stable_mosaic.version = 11 : i64} {
  func.func @_smooth_f1_kernel(%arg0: i32, %arg1: i32, %arg2: memref<64x128xf32, #tpu.memory_space<vmem>>, %arg3: memref<64x128xf32, #tpu.memory_space<vmem>>, %arg4: memref<1x128xf32, #tpu.memory_space<vmem>>, %arg5: memref<8x128xf32, #tpu.memory_space<vmem>>, %arg6: memref<8x128xf32, #tpu.memory_space<vmem>>) attributes {dimension_semantics = [#tpu.dimension_semantics<parallel>, #tpu.dimension_semantics<arbitrary>], iteration_bounds = array<i64: 1, 1>, scalar_prefetch = 0 : i64, scratch_operands = 2 : i64, tpu.core_type = #tpu.core_type<tc>, window_params = [{transform_indices = @transform_0, window_bounds = array<i64: 64, 128>}, {transform_indices = @transform_1, window_bounds = array<i64: 64, 128>}, {transform_indices = @transform_2, window_bounds = array<i64: 1, 128>}]} {
    %c0_i32 = arith.constant 0 : i32
    %0 = arith.cmpi eq, %arg1, %c0_i32 : i32
    %1 = arith.extui %0 : i1 to i32
    %c0_i32_0 = arith.constant 0 : i32
    %2 = arith.cmpi ne, %1, %c0_i32_0 : i32
    scf.if %2 {
      %cst_19 = arith.constant 0.000000e+00 : f32
      %29 = vector.broadcast %cst_19 : f32 to vector<8x128xf32>
      %c0_20 = arith.constant 0 : index
      %c0_21 = arith.constant 0 : index
      %30 = vector.load %arg5[%c0_20, %c0_21] : memref<8x128xf32, #tpu.memory_space<vmem>>, vector<8x128xf32>
      tpu.vector_store %arg5[%c0_20, %c0_21], %29 {strides = array<i32>} : memref<8x128xf32, #tpu.memory_space<vmem>>, vector<8x128xf32>,
      %cst_22 = arith.constant 0.000000e+00 : f32
      %31 = vector.broadcast %cst_22 : f32 to vector<8x128xf32>
      %c0_23 = arith.constant 0 : index
      %c0_24 = arith.constant 0 : index
      %32 = vector.load %arg6[%c0_23, %c0_24] : memref<8x128xf32, #tpu.memory_space<vmem>>, vector<8x128xf32>
      tpu.vector_store %arg6[%c0_23, %c0_24], %31 {strides = array<i32>} : memref<8x128xf32, #tpu.memory_space<vmem>>, vector<8x128xf32>,
    } else {
    }
    %c0 = arith.constant 0 : index
    %c0_1 = arith.constant 0 : index
    %3 = vector.load %arg2[%c0, %c0_1] : memref<64x128xf32, #tpu.memory_space<vmem>>, vector<64x128xf32>
    %cst = arith.constant 5.000000e-01 : f32
    %4 = vector.broadcast %cst : f32 to vector<64x128xf32>
    %5 = arith.mulf %4, %3 : vector<64x128xf32>
    %cst_2 = arith.constant 0.000000e+00 : f32
    %6 = vector.broadcast %cst_2 : f32 to vector<64x128xf32>
    %7 = arith.subf %5, %6 : vector<64x128xf32>
    %8 = math.tanh %7 : vector<64x128xf32>
    %cst_3 = arith.constant 5.000000e-01 : f32
    %9 = vector.broadcast %cst_3 : f32 to vector<64x128xf32>
    %10 = arith.mulf %9, %8 : vector<64x128xf32>
    %cst_4 = arith.constant 5.000000e-01 : f32
    %11 = vector.broadcast %cst_4 : f32 to vector<64x128xf32>
    %12 = arith.addf %11, %10 : vector<64x128xf32>
    %c0_5 = arith.constant 0 : index
    %c0_6 = arith.constant 0 : index
    %13 = vector.load %arg3[%c0_5, %c0_6] : memref<64x128xf32, #tpu.memory_space<vmem>>, vector<64x128xf32>
    %14 = vector.shape_cast %12 : vector<64x128xf32> to vector<8x8x128xf32>
    %15 = vector.shape_cast %13 : vector<64x128xf32> to vector<8x8x128xf32>
    %c0_7 = arith.constant 0 : index
    %c0_8 = arith.constant 0 : index
    %16 = vector.load %arg5[%c0_7, %c0_8] : memref<8x128xf32, #tpu.memory_space<vmem>>, vector<8x128xf32>
    %17 = arith.mulf %14, %15 : vector<8x8x128xf32>
    %cst_9 = arith.constant dense<0.000000e+00> : vector<8x128xf32>
    %18 = vector.multi_reduction <add>, %17, %cst_9 [0] : vector<8x8x128xf32> to vector<8x128xf32>
    %19 = arith.addf %16, %18 : vector<8x128xf32>
    %c0_10 = arith.constant 0 : index
    %c0_11 = arith.constant 0 : index
    %20 = vector.load %arg5[%c0_10, %c0_11] : memref<8x128xf32, #tpu.memory_space<vmem>>, vector<8x128xf32>
    tpu.vector_store %arg5[%c0_10, %c0_11], %19 {strides = array<i32>} : memref<8x128xf32, #tpu.memory_space<vmem>>, vector<8x128xf32>,
    %c0_12 = arith.constant 0 : index
    %c0_13 = arith.constant 0 : index
    %21 = vector.load %arg6[%c0_12, %c0_13] : memref<8x128xf32, #tpu.memory_space<vmem>>, vector<8x128xf32>
    %22 = arith.addf %14, %15 : vector<8x8x128xf32>
    %cst_14 = arith.constant dense<0.000000e+00> : vector<8x128xf32>
    %23 = vector.multi_reduction <add>, %22, %cst_14 [0] : vector<8x8x128xf32> to vector<8x128xf32>
    %24 = arith.addf %21, %23 : vector<8x128xf32>
    %c0_15 = arith.constant 0 : index
    %c0_16 = arith.constant 0 : index
    %25 = vector.load %arg6[%c0_15, %c0_16] : memref<8x128xf32, #tpu.memory_space<vmem>>, vector<8x128xf32>
    tpu.vector_store %arg6[%c0_15, %c0_16], %24 {strides = array<i32>} : memref<8x128xf32, #tpu.memory_space<vmem>>, vector<8x128xf32>,
    %c0_i32_17 = arith.constant 0 : i32
    %26 = arith.cmpi eq, %arg1, %c0_i32_17 : i32
    %27 = arith.extui %26 : i1 to i32
    %c0_i32_18 = arith.constant 0 : i32
    %28 = arith.cmpi ne, %27, %c0_i32_18 : i32
    scf.if %28 {
      %c0_19 = arith.constant 0 : index
      %c0_20 = arith.constant 0 : index
      %29 = vector.load %arg5[%c0_19, %c0_20] : memref<8x128xf32, #tpu.memory_space<vmem>>, vector<8x128xf32>
      %cst_21 = arith.constant dense<0.000000e+00> : vector<128xf32>
      %30 = vector.multi_reduction <add>, %29, %cst_21 [0] : vector<8x128xf32> to vector<128xf32>
      %31 = vector.shape_cast %30 : vector<128xf32> to vector<1x128xf32>
      %c0_22 = arith.constant 0 : index
      %c0_23 = arith.constant 0 : index
      %32 = vector.load %arg6[%c0_22, %c0_23] : memref<8x128xf32, #tpu.memory_space<vmem>>, vector<8x128xf32>
      %cst_24 = arith.constant dense<0.000000e+00> : vector<128xf32>
      %33 = vector.multi_reduction <add>, %32, %cst_24 [0] : vector<8x128xf32> to vector<128xf32>
      %34 = vector.shape_cast %33 : vector<128xf32> to vector<1x128xf32>
      %cst_25 = arith.constant 2.000000e+00 : f32
      %35 = vector.broadcast %cst_25 : f32 to vector<1x128xf32>
      %36 = arith.mulf %35, %31 : vector<1x128xf32>
      %cst_26 = arith.constant 1.1920929E-7 : f32
      %37 = vector.broadcast %cst_26 : f32 to vector<1x128xf32>
      %38 = arith.addf %34, %37 : vector<1x128xf32>
      %39 = arith.divf %36, %38 : vector<1x128xf32>
      %cst_27 = arith.constant 1.000000e+00 : f32
      %40 = vector.broadcast %cst_27 : f32 to vector<1x128xf32>
      %41 = arith.subf %40, %39 : vector<1x128xf32>
      %c0_28 = arith.constant 0 : index
      %c0_29 = arith.constant 0 : index
      %42 = vector.load %arg4[%c0_28, %c0_29] : memref<1x128xf32, #tpu.memory_space<vmem>>, vector<1x128xf32>
      tpu.vector_store %arg4[%c0_28, %c0_29], %41 {strides = array<i32>} : memref<1x128xf32, #tpu.memory_space<vmem>>, vector<1x128xf32>,
    } else {
    }
    return
  }
  func.func @transform_0(%arg0: i32, %arg1: i32) -> (i32, i32) {
    %c0_i32 = arith.constant 0 : i32
    return %arg1, %arg0 : i32, i32
  }
  func.func @transform_1(%arg0: i32, %arg1: i32) -> (i32, i32) {
    %c0_i32 = arith.constant 0 : i32
    return %arg1, %arg0 : i32, i32
  }
  func.func @transform_2(%arg0: i32, %arg1: i32) -> (i32, i32) {
    %c0_i32 = arith.constant 0 : i32
    %c0_i32_0 = arith.constant 0 : i32
    return %c0_i32, %arg0 : i32, i32
  }
}

</mosaic_0001>

<llo_original>
// kernel: tpu_custom_call.1
$region0: #{tpu_custom_call.1}
  #allocation0 [shape = 'u32[]', space=smem, size = 0x4, offset = 0x4, fixed_abs, tag = 'smem constant byte address 0x4 - core index']
  #allocation1 [shape = 'u32[144,128]{1,0:T(1,128)}', space=vmem, size = 0x12000, scoped, tag = 'internal scratch']
  #allocation2 [shape = 'f32[8,128]{1,0:T(8,128)}', space=vmem, size = 0x1000, scoped, tag = 'scratch operand']
  #allocation3 [shape = 'f32[8,128]{1,0:T(8,128)}', space=vmem, size = 0x1000, scoped, tag = 'scratch operand']
  %s0 = inlined_call_operand.hbm [shape: f32[64,128], index: 0, kind: input, shape index: {}]
  %s1 = inlined_call_operand.hbm [shape: f32[64,128], index: 1, kind: input, shape index: {}]
  %s2 = inlined_call_operand.hbm [shape: f32[1,128], index: 2, kind: output, shape index: {}]
  %s3 = sld [smem:[#allocation0]]
  $region34: #{tpu_custom_call.1} parent=0
    _
  %s5 = ssub.s32 1, %s3
  %s6 = scalar_select 0, %s5, %s3
  $region1: #{tpu_custom_call.1} parent=0
    #allocation4 [shape = 'u8[32768]{0}', space=vmem, size = 0x8000, scoped, tag = 'input window, operand 0, single buffered']
    #allocation5 [shape = 's32[1]{0}', space=sflag, size = 0x4, scoped, tag = 'scoped memory for tpu_custom_call.1']
    #allocation6 [shape = 's32[1]{0}', space=sflag, size = 0x4, scoped, tag = 'scoped memory for tpu_custom_call.1']
    #allocation7 [shape = 'u8[32768]{0}', space=vmem, size = 0x8000, scoped, tag = 'input window, operand 1, single buffered']
    #allocation8 [shape = 's32[1]{0}', space=sflag, size = 0x4, scoped, tag = 'scoped memory for tpu_custom_call.1']
    #allocation9 [shape = 'u8[512]{0}', space=vmem, size = 0x400, scoped, tag = 'output window, operand 0, single buffered']
    %7 = vsyncpa [#allocation5], 0
    %8 = vsyncpa [#allocation8], 0
    %9 = vsyncpa [#allocation6], 0
    // Predicated region
    $region2: #{tpu_custom_call.1} parent=1 // pred_check
      _
    $region3: #{tpu_custom_call.1} parent=1 // pred_check_branch
      %11 = sbr.rel (0) target = $region5
    $region4: #{tpu_custom_call.1} parent=1 // pred_region
      %s13 = ssub.s32 1024, 1024
      %14 = vsyncadd [#allocation5], %s13
      %s15 = sshll.u32 [#allocation4], 4
      %s16 = int_to_ptr.vmem [resolvable:$true] %s15
      %21 = dma.hbm_to_vmem [thread:$0]  %s0, 1024, %s16, [#allocation5], 128, 128, 8
    $region5: #{tpu_custom_call.1} parent=1 // pred_fallthru
      _
    // Predicated region
    $region6: #{tpu_custom_call.1} parent=1 // pred_check
      _
    $region7: #{tpu_custom_call.1} parent=1 // pred_check_branch
      %23 = sbr.rel (0) target = $region9
    $region8: #{tpu_custom_call.1} parent=1 // pred_region
      %s25 = ssub.s32 1024, 1024
      %26 = vsyncadd [#allocation8], %s25
      %s27 = sshll.u32 [#allocation7], 4
      %s28 = int_to_ptr.vmem [resolvable:$true] %s27
      %33 = dma.hbm_to_vmem [thread:$0]  %s1, 1024, %s28, [#allocation8], 128, 128, 8
    $region9: #{tpu_custom_call.1} parent=1 // pred_fallthru
      _
    // Predicated region
    $region10: #{tpu_custom_call.1} parent=1 // pred_check
      _
    $region11: #{tpu_custom_call.1} parent=1 // pred_check_branch
      %35 = sbr.rel (0) target = $region13
    $region12: #{tpu_custom_call.1} parent=1 // pred_region
      %36 = dma.done [#allocation5], 1024
    $region13: #{tpu_custom_call.1} parent=1 // pred_fallthru
      _
    // Predicated region
    $region14: #{tpu_custom_call.1} parent=1 // pred_check
      _
    $region15: #{tpu_custom_call.1} parent=1 // pred_check_branch
      %38 = sbr.rel (0) target = $region17
    $region16: #{tpu_custom_call.1} parent=1 // pred_region
      %39 = dma.done [#allocation8], 1024
    $region17: #{tpu_custom_call.1} parent=1 // pred_fallthru
      _
    %p40 = scmp.eq.s32.totalorder 0, 0
    // Predicated region
    $region18: #{tpu_custom_call.1} parent=1 // pred_check
      %p41 = pneg %p40
    $region19: #{tpu_custom_call.1} parent=1 // pred_check_branch
      %43 = sbr.rel (%p41) target = $region21
    $region20: #{tpu_custom_call.1} parent=1 // pred_region
      %44 = vst [vmem:[#allocation2] sm:$0xff] 0.0
      %45 = vst [vmem:[#allocation3] sm:$0xff] 0.0
    $region21: #{tpu_custom_call.1} parent=1 // pred_fallthru
      _
    %v46 = vld [vmem:[#allocation4] sm:$0xff]
    %v47 = vld [vmem:[#allocation4 + $0x8] sm:$0xff]
    %v48 = vld [vmem:[#allocation4 + $0x10] sm:$0xff]
    %v49 = vld [vmem:[#allocation4 + $0x18] sm:$0xff]
    %v50 = vld [vmem:[#allocation4 + $0x20] sm:$0xff]
    %v51 = vld [vmem:[#allocation4 + $0x28] sm:$0xff]
    %v52 = vld [vmem:[#allocation4 + $0x30] sm:$0xff]
    %v53 = vld [vmem:[#allocation4 + $0x38] sm:$0xff]
    %v54 = vmul.f32 %v46, 0.5
    %v55 = vmul.f32 %v47, 0.5
    %v56 = vmul.f32 %v48, 0.5
    %v57 = vmul.f32 %v49, 0.5
    %v58 = vmul.f32 %v50, 0.5
    %v59 = vmul.f32 %v51, 0.5
    %v60 = vmul.f32 %v52, 0.5
    %v61 = vmul.f32 %v53, 0.5
    %v62 = vtanh.pop %v54
    %v63 = vtanh.pop %v55
    %v64 = vtanh.pop %v56
    %v65 = vtanh.pop %v57
    %v66 = vtanh.pop %v58
    %v67 = vtanh.pop %v59
    %v68 = vtanh.pop %v60
    %v69 = vtanh.pop %v61
    %v70 = vmul.f32 %v62, 0.5
    %v71 = vmul.f32 %v63, 0.5
    %v72 = vmul.f32 %v64, 0.5
    %v73 = vmul.f32 %v65, 0.5
    %v74 = vmul.f32 %v66, 0.5
    %v75 = vmul.f32 %v67, 0.5
    %v76 = vmul.f32 %v68, 0.5
    %v77 = vmul.f32 %v69, 0.5
    %v78 = vadd.f32 %v70, 0.5
    %v79 = vadd.f32 %v71, 0.5
    %v80 = vadd.f32 %v72, 0.5
    %v81 = vadd.f32 %v73, 0.5
    %v82 = vadd.f32 %v74, 0.5
    %v83 = vadd.f32 %v75, 0.5
    %v84 = vadd.f32 %v76, 0.5
    %v85 = vadd.f32 %v77, 0.5
    %v86 = vld [vmem:[#allocation7] sm:$0xff]
    %v87 = vld [vmem:[#allocation7 + $0x8] sm:$0xff]
    %v88 = vld [vmem:[#allocation7 + $0x10] sm:$0xff]
    %v89 = vld [vmem:[#allocation7 + $0x18] sm:$0xff]
    %v90 = vld [vmem:[#allocation7 + $0x20] sm:$0xff]
    %v91 = vld [vmem:[#allocation7 + $0x28] sm:$0xff]
    %v92 = vld [vmem:[#allocation7 + $0x30] sm:$0xff]
    %v93 = vld [vmem:[#allocation7 + $0x38] sm:$0xff]
    %v94 = vld [vmem:[#allocation2] sm:$0xff]
    %v95 = vmul.f32 %v78, %v86
    %v96 = vmul.f32 %v79, %v87
    %v97 = vmul.f32 %v80, %v88
    %v98 = vmul.f32 %v81, %v89
    %v99 = vmul.f32 %v82, %v90
    %v100 = vmul.f32 %v83, %v91
    %v101 = vmul.f32 %v84, %v92
    %v102 = vmul.f32 %v85, %v93
    %v103 = vadd.f32 %v95, %v96
    %v104 = vadd.f32 %v103, %v97
    %v105 = vadd.f32 %v104, %v98
    %v106 = vadd.f32 %v105, %v99
    %v107 = vadd.f32 %v106, %v100
    %v108 = vadd.f32 %v107, %v101
    %v109 = vadd.f32 %v108, %v102
    %v110 = vadd.f32 %v94, %v109
    %111 = vst [vmem:[#allocation2] sm:$0xff] %v110
    %v112 = vld [vmem:[#allocation3] sm:$0xff]
    %v113 = vadd.f32 %v78, %v86
    %v114 = vadd.f32 %v79, %v87
    %v115 = vadd.f32 %v80, %v88
    %v116 = vadd.f32 %v81, %v89
    %v117 = vadd.f32 %v82, %v90
    %v118 = vadd.f32 %v83, %v91
    %v119 = vadd.f32 %v84, %v92
    %v120 = vadd.f32 %v85, %v93
    %v121 = vadd.f32 %v113, %v114
    %v122 = vadd.f32 %v121, %v115
    %v123 = vadd.f32 %v122, %v116
    %v124 = vadd.f32 %v123, %v117
    %v125 = vadd.f32 %v124, %v118
    %v126 = vadd.f32 %v125, %v119
    %v127 = vadd.f32 %v126, %v120
    %v128 = vadd.f32 %v112, %v127
    %129 = vst [vmem:[#allocation3] sm:$0xff] %v128
    // Predicated region
    $region22: #{tpu_custom_call.1} parent=1 // pred_check
      %p130 = pneg %p40
    $region23: #{tpu_custom_call.1} parent=1 // pred_check_branch
      %132 = sbr.rel (%p130) target = $region25
    $region24: #{tpu_custom_call.1} parent=1 // pred_region
      %v133 = vld [vmem:[#allocation2] sm:$0xff]
      %v134 = vrot.slane %v133, 4
      %v135 = vadd.f32 %v133, %v134
      %v136 = vrot.slane %v135, 2
      %v137 = vadd.f32 %v135, %v136
      %v138 = vrot.slane %v137, 1
      %v139 = vadd.f32 %v137, %v138
      %v140 = vld [vmem:[#allocation3] sm:$0xff]
      %v141 = vrot.slane %v140, 4
      %v142 = vadd.f32 %v140, %v141
      %v143 = vrot.slane %v142, 2
      %v144 = vadd.f32 %v142, %v143
      %v145 = vrot.slane %v144, 1
      %v146 = vadd.f32 %v144, %v145
      %v147 = vmul.f32 %v139, 2.0
      %v148 = vadd.f32 %v146, 1.1920929e-07
      %v149 = vrcp.pop %v148
      %v150 = vmul.f32 %v147, %v149
      %v151 = vsub.f32 1.0, %v150
      %152 = vst [vmem:[#allocation9] sm:$0x1] %v151
    $region25: #{tpu_custom_call.1} parent=1 // pred_fallthru
      _
    // Predicated region
    $region26: #{tpu_custom_call.1} parent=1 // pred_check
      _
    $region27: #{tpu_custom_call.1} parent=1 // pred_check_branch
      %154 = sbr.rel (0) target = $region29
    $region28: #{tpu_custom_call.1} parent=1 // pred_region
      %s156 = ssub.s32 16, 16
      %157 = vsyncadd [#allocation6], %s156
      %s159 = sshll.u32 [#allocation9], 4
      %s160 = int_to_ptr.vmem [resolvable:$true] %s159
      %162 = dma.vmem_to_hbm [thread:$0]  %s160, 16, %s2, [#allocation6]
    $region29: #{tpu_custom_call.1} parent=1 // pred_fallthru
      _
    // Predicated region
    $region30: #{tpu_custom_call.1} parent=1 // pred_check
      _
    $region31: #{tpu_custom_call.1} parent=1 // pred_check_branch
      %164 = sbr.rel (0) target = $region33
    $region32: #{tpu_custom_call.1} parent=1 // pred_region
      %165 = dma.done [#allocation6], 16
    $region33: #{tpu_custom_call.1} parent=1 // pred_fallthru
      _
    %166 = vsyncpa [#allocation5], 1
    %167 = vsyncpa [#allocation8], 1
    %168 = vsyncpa [#allocation6], 1

</llo_original>
